<compile_context>
chip_gen: v7x
topology: tpu7x:2x2x1
jax: 0.10.0
libtpu: 0.0.40
codegen_flags: <defaults>
</compile_context>

<pallas_src>
import jax
import jax.numpy as jnp
from jax.experimental import pallas as pl
from jax.experimental.pallas import tpu as pltpu

_LANES = 128
_NUM_CLASSES = 10
_BN_EPS = 1e-5
_TB_MAX = 1024          # max batch-tile rows


def _mlp_kernel(x_ref, w0_ref, a0_ref, c0_ref, w1_ref, a1_ref, c1_ref,
                w2_ref, b2_ref, o_ref):
    # x arrives as f32; cast to bf16 here (fused) so the wrapper never re-materializes it.
    x = x_ref[...].astype(jnp.bfloat16)                              # (TB, D)

    # fc0 + BatchNorm1d(100) folded affine, then ReLU (f32 accumulate / elementwise)
    h0 = jnp.dot(x, w0_ref[...], preferred_element_type=jnp.float32)
    h0 = jnp.maximum(h0 * a0_ref[...] + c0_ref[...], 0.0)

    # fc1 + BatchNorm1d(50) folded affine, then ReLU
    h1 = jnp.dot(h0.astype(jnp.bfloat16), w1_ref[...],
                 preferred_element_type=jnp.float32)
    h1 = jnp.maximum(h1 * a1_ref[...] + c1_ref[...], 0.0)

    # fc2 (+ bias)
    logits = jnp.dot(h1.astype(jnp.bfloat16), w2_ref[...],
                     preferred_element_type=jnp.float32) + b2_ref[...]

    # Mask zero-padded class lanes (>= 10) so they do not pollute the logsumexp.
    lane = jax.lax.broadcasted_iota(jnp.int32, logits.shape, 1)
    logits = jnp.where(lane < _NUM_CLASSES, logits, -1e30)

    # numerically stable log_softmax over classes (all in f32)
    m = jnp.max(logits, axis=-1, keepdims=True)
    shifted = logits - m
    lse = jnp.log(jnp.sum(jnp.exp(shifted), axis=-1, keepdims=True))
    o_ref[...] = shifted - lse


def _round_up(n, m):
    return ((n + m - 1) // m) * m


def _pad_to(x, shape):
    pads = [(0, s - d) for s, d in zip(shape, x.shape)]
    return jnp.pad(x, pads)


def prepare_params(params):
    """One-time fold of fc-bias + eval-mode BN into per-feature affines, plus lane
    padding to 128 and bf16 weight cast.  Hoisted out of the per-call forward."""
    w0, b0 = params["w0"], params["b0"]
    w1, b1 = params["w1"], params["b1"]
    w2, b2 = params["w2"], params["b2"]
    g1, be1, mu1, var1 = (params["bn1"][k] for k in ("gamma", "beta", "mean", "var"))
    g2, be2, mu2, var2 = (params["bn2"][k] for k in ("gamma", "beta", "mean", "var"))

    image_size = w0.shape[0]
    H0, H1 = w0.shape[1], w1.shape[1]          # 100, 50

    # Fold fc-bias + BN into per-feature affine: y = (x @ W) * a + c
    s1 = g1 * jax.lax.rsqrt(var1 + _BN_EPS)
    a0 = s1
    c0 = (b0 - mu1) * s1 + be1
    s2 = g2 * jax.lax.rsqrt(var2 + _BN_EPS)
    a1 = s2
    c1 = (b1 - mu2) * s2 + be2

    # Lane-pad all feature dims to 128.  Padded scale/shift lanes are 0, so padded hidden
    # units are exactly 0 after affine+relu and never affect downstream matmuls.
    w0p = _pad_to(w0, (image_size, _LANES)).astype(jnp.bfloat16)
    w1p = _pad_to(w1, (_LANES, _LANES)).astype(jnp.bfloat16)
    w2p = _pad_to(w2, (_LANES, _LANES)).astype(jnp.bfloat16)
    a0p = _pad_to(a0.reshape(1, H0), (1, _LANES)).astype(jnp.float32)
    c0p = _pad_to(c0.reshape(1, H0), (1, _LANES)).astype(jnp.float32)
    a1p = _pad_to(a1.reshape(1, H1), (1, _LANES)).astype(jnp.float32)
    c1p = _pad_to(c1.reshape(1, H1), (1, _LANES)).astype(jnp.float32)
    b2p = _pad_to(b2.reshape(1, _NUM_CLASSES), (1, _LANES)).astype(jnp.float32)

    return (w0p, a0p, c0p, w1p, a1p, c1p, w2p, b2p)


def _choose_tb(B):
    """Batch-tile rows.  Big tiles amortize per-step overhead; >=2 tiles (when B >= 32)
    so v7x's two TensorCores both get work; tile shaped from cdiv(B, n_tiles) so the tail
    tile is never mostly padding; multiple of 8 (f32 sublane) when the grid has >1 step."""
    if B < 32:
        return B                                   # single full-array block, no padding
    n_tiles = max(2, pl.cdiv(B, _TB_MAX))
    return min(_round_up(pl.cdiv(B, n_tiles), 8), _round_up(B, 8))


def model3_forward(x_nchw, prepared):
    """Inference forward of Model3. Returns (B, 10) log-probabilities (f32)."""
    w0p, a0p, c0p, w1p, a1p, c1p, w2p, b2p = prepared
    image_size = w0p.shape[0]
    B = x_nchw.shape[0]

    # == torch x.view(-1, image_size); fed to the kernel as f32, cast fused in-kernel.
    x2d = x_nchw.reshape(B, image_size)

    tb = _choose_tb(B)
    grid = (pl.cdiv(B, tb),)                        # ragged tail block handled by Pallas

    def const(shape):
        return pl.BlockSpec(shape, lambda i: (0, 0))   # resident across grid steps

    in_specs = [
        pl.BlockSpec((tb, image_size), lambda i: (i, 0)),           # x tile (f32)
        const((image_size, _LANES)), const((1, _LANES)), const((1, _LANES)),
        const((_LANES, _LANES)),     const((1, _LANES)), const((1, _LANES)),
        const((_LANES, _LANES)),     const((1, _LANES)),
    ]
    out_specs = pl.BlockSpec((tb, _LANES), lambda i: (i, 0))

    flops = 2 * B * (image_size * _LANES + 2 * _LANES * _LANES)
    bytes_accessed = (x2d.size * 4 + w0p.size * 2 + w1p.size * 2 + w2p.size * 2
                      + B * _LANES * 4)
    cost = pl.CostEstimate(flops=flops,
                           transcendentals=B * _LANES,
                           bytes_accessed=bytes_accessed)

    out = pl.pallas_call(
        _mlp_kernel,
        out_shape=jax.ShapeDtypeStruct((B, _LANES), jnp.float32),
        grid=grid,
        in_specs=in_specs,
        out_specs=out_specs,
        compiler_params=pltpu.CompilerParams(
            dimension_semantics=("parallel",),
            vmem_limit_bytes=48 << 20),
        cost_estimate=cost,
    )(x2d, w0p, a0p, c0p, w1p, a1p, c1p, w2p, b2p)

    # Consumers that only need lanes 0..9 lazily can take `out` as-is; slice kept here
    # to match the PyTorch forward's (B, 10) contract.
    return out[:, :_NUM_CLASSES]


def init_params(key, image_size):
    """PyTorch-style Linear init U(-1/sqrt(fan_in), +1/sqrt(fan_in)); BN at defaults."""
    def linear(k, fan_in, fan_out):
        kw, kb = jax.random.split(k)
        bound = 1.0 / jnp.sqrt(jnp.float32(fan_in))
        w = jax.random.uniform(kw, (fan_in, fan_out), jnp.float32, -bound, bound)
        b = jax.random.uniform(kb, (fan_out,), jnp.float32, -bound, bound)
        return w, b

    def bn(n):
        return {"gamma": jnp.ones((n,), jnp.float32),
                "beta": jnp.zeros((n,), jnp.float32),
                "mean": jnp.zeros((n,), jnp.float32),
                "var": jnp.ones((n,), jnp.float32)}

    k0, k1, k2 = jax.random.split(key, 3)
    w0, b0 = linear(k0, image_size, 100)
    w1, b1 = linear(k1, 100, 50)
    w2, b2 = linear(k2, 50, 10)
    return {"w0": w0, "b0": b0, "w1": w1, "b1": b1, "w2": w2, "b2": b2,
            "bn1": bn(100), "bn2": bn(50)}


if __name__ == "__main__":
    key = jax.random.PRNGKey(0)
    kx, kp = jax.random.split(key)

    B, C, H, W = 2, 4, 16, 16
    image_size = C * H * W                     # 1024

    x = jax.random.normal(kx, (B, C, H, W), dtype=jnp.float32)
    params = init_params(kp, image_size)

    prepared = prepare_params(params)          # one-time fold/pad/cast (outside forward)
    jax.block_until_ready(prepared)

    out = model3_forward(x, prepared)
    jax.block_until_ready(out)

    assert out.shape == (B, 10)
    row_sums = jnp.exp(out).sum(axis=1)        # softmax rows must sum to ~1
    assert bool(jnp.all(jnp.abs(row_sums - 1.0) < 1e-4))

    print("KERNEL_OK")
</pallas_src>

<mosaic_0001>
module attributes {stable_mosaic.version = 11 : i64} {
  func.func @_mlp_kernel(%arg0: i32, %arg1: memref<2x1024xf32, #tpu.memory_space<vmem>>, %arg2: memref<1024x128xbf16, #tpu.memory_space<vmem>>, %arg3: memref<1x128xf32, #tpu.memory_space<vmem>>, %arg4: memref<1x128xf32, #tpu.memory_space<vmem>>, %arg5: memref<128x128xbf16, #tpu.memory_space<vmem>>, %arg6: memref<1x128xf32, #tpu.memory_space<vmem>>, %arg7: memref<1x128xf32, #tpu.memory_space<vmem>>, %arg8: memref<128x128xbf16, #tpu.memory_space<vmem>>, %arg9: memref<1x128xf32, #tpu.memory_space<vmem>>, %arg10: memref<2x128xf32, #tpu.memory_space<vmem>>) attributes {dimension_semantics = [#tpu.dimension_semantics<parallel>], iteration_bounds = array<i64: 1>, scalar_prefetch = 0 : i64, scratch_operands = 0 : i64, tpu.core_type = #tpu.core_type<tc>, window_params = [{transform_indices = @transform_0, window_bounds = array<i64: 2, 1024>}, {pipeline_mode = #tpu.pipeline_mode<synchronous>, transform_indices = @transform_1, window_bounds = array<i64: 1024, 128>}, {pipeline_mode = #tpu.pipeline_mode<synchronous>, transform_indices = @transform_2, window_bounds = array<i64: 1, 128>}, {pipeline_mode = #tpu.pipeline_mode<synchronous>, transform_indices = @transform_3, window_bounds = array<i64: 1, 128>}, {pipeline_mode = #tpu.pipeline_mode<synchronous>, transform_indices = @transform_4, window_bounds = array<i64: 128, 128>}, {pipeline_mode = #tpu.pipeline_mode<synchronous>, transform_indices = @transform_5, window_bounds = array<i64: 1, 128>}, {pipeline_mode = #tpu.pipeline_mode<synchronous>, transform_indices = @transform_6, window_bounds = array<i64: 1, 128>}, {pipeline_mode = #tpu.pipeline_mode<synchronous>, transform_indices = @transform_7, window_bounds = array<i64: 128, 128>}, {pipeline_mode = #tpu.pipeline_mode<synchronous>, transform_indices = @transform_8, window_bounds = array<i64: 1, 128>}, {transform_indices = @transform_9, window_bounds = array<i64: 2, 128>}]} {
    %c0 = arith.constant 0 : index
    %c0_0 = arith.constant 0 : index
    %0 = vector.load %arg1[%c0, %c0_0] : memref<2x1024xf32, #tpu.memory_space<vmem>>, vector<2x1024xf32>
    %1 = arith.truncf %0 : vector<2x1024xf32> to vector<2x1024xbf16>
    %c0_1 = arith.constant 0 : index
    %c0_2 = arith.constant 0 : index
    %2 = vector.load %arg2[%c0_1, %c0_2] : memref<1024x128xbf16, #tpu.memory_space<vmem>>, vector<1024x128xbf16>
    %cst = arith.constant dense<0.000000e+00> : vector<2x128xf32>
    %3 = tpu.matmul %1, %2, %cst {dimension_numbers = #tpu.dot_dimension_numbers<[1], [0], [0], [1], [0, 0, 1, 1], [], []>} : vector<2x1024xbf16>, vector<1024x128xbf16>, vector<2x128xf32> -> vector<2x128xf32>
    %c0_3 = arith.constant 0 : index
    %c0_4 = arith.constant 0 : index
    %4 = vector.load %arg3[%c0_3, %c0_4] : memref<1x128xf32, #tpu.memory_space<vmem>>, vector<1x128xf32>
    %5 = vector.broadcast %4 : vector<1x128xf32> to vector<2x128xf32>
    %6 = arith.mulf %3, %5 : vector<2x128xf32>
    %c0_5 = arith.constant 0 : index
    %c0_6 = arith.constant 0 : index
    %7 = vector.load %arg4[%c0_5, %c0_6] : memref<1x128xf32, #tpu.memory_space<vmem>>, vector<1x128xf32>
    %8 = vector.broadcast %7 : vector<1x128xf32> to vector<2x128xf32>
    %9 = arith.addf %6, %8 : vector<2x128xf32>
    %cst_7 = arith.constant 0.000000e+00 : f32
    %10 = vector.broadcast %cst_7 : f32 to vector<2x128xf32>
    %11 = arith.maximumf %9, %10 : vector<2x128xf32>
    %12 = arith.truncf %11 : vector<2x128xf32> to vector<2x128xbf16>
    %c0_8 = arith.constant 0 : index
    %c0_9 = arith.constant 0 : index
    %13 = vector.load %arg5[%c0_8, %c0_9] : memref<128x128xbf16, #tpu.memory_space<vmem>>, vector<128x128xbf16>
    %cst_10 = arith.constant dense<0.000000e+00> : vector<2x128xf32>
    %14 = tpu.matmul %12, %13, %cst_10 {dimension_numbers = #tpu.dot_dimension_numbers<[1], [0], [0], [1], [0, 0, 1, 1], [], []>} : vector<2x128xbf16>, vector<128x128xbf16>, vector<2x128xf32> -> vector<2x128xf32>
    %c0_11 = arith.constant 0 : index
    %c0_12 = arith.constant 0 : index
    %15 = vector.load %arg6[%c0_11, %c0_12] : memref<1x128xf32, #tpu.memory_space<vmem>>, vector<1x128xf32>
    %16 = vector.broadcast %15 : vector<1x128xf32> to vector<2x128xf32>
    %17 = arith.mulf %14, %16 : vector<2x128xf32>
    %c0_13 = arith.constant 0 : index
    %c0_14 = arith.constant 0 : index
    %18 = vector.load %arg7[%c0_13, %c0_14] : memref<1x128xf32, #tpu.memory_space<vmem>>, vector<1x128xf32>
    %19 = vector.broadcast %18 : vector<1x128xf32> to vector<2x128xf32>
    %20 = arith.addf %17, %19 : vector<2x128xf32>
    %cst_15 = arith.constant 0.000000e+00 : f32
    %21 = vector.broadcast %cst_15 : f32 to vector<2x128xf32>
    %22 = arith.maximumf %20, %21 : vector<2x128xf32>
    %23 = arith.truncf %22 : vector<2x128xf32> to vector<2x128xbf16>
    %c0_16 = arith.constant 0 : index
    %c0_17 = arith.constant 0 : index
    %24 = vector.load %arg8[%c0_16, %c0_17] : memref<128x128xbf16, #tpu.memory_space<vmem>>, vector<128x128xbf16>
    %cst_18 = arith.constant dense<0.000000e+00> : vector<2x128xf32>
    %25 = tpu.matmul %23, %24, %cst_18 {dimension_numbers = #tpu.dot_dimension_numbers<[1], [0], [0], [1], [0, 0, 1, 1], [], []>} : vector<2x128xbf16>, vector<128x128xbf16>, vector<2x128xf32> -> vector<2x128xf32>
    %c0_19 = arith.constant 0 : index
    %c0_20 = arith.constant 0 : index
    %26 = vector.load %arg9[%c0_19, %c0_20] : memref<1x128xf32, #tpu.memory_space<vmem>>, vector<1x128xf32>
    %27 = vector.broadcast %26 : vector<1x128xf32> to vector<2x128xf32>
    %28 = arith.addf %25, %27 : vector<2x128xf32>
    %29 = tpu.iota {dimensions = array<i32: 1>} : vector<2x128xi32>
    %c10_i32 = arith.constant 10 : i32
    %30 = vector.broadcast %c10_i32 : i32 to vector<2x128xi32>
    %31 = arith.cmpi slt, %29, %30 : vector<2x128xi32>
    %cst_21 = arith.constant -1.000000e+30 : f32
    %32 = vector.broadcast %cst_21 : f32 to vector<2x128xf32>
    %33 = arith.select %31, %28, %32 : vector<2x128xi1>, vector<2x128xf32>
    %cst_22 = arith.constant dense<0xFF800000> : vector<2xf32>
    %34 = vector.multi_reduction <maximumf>, %33, %cst_22 [1] : vector<2x128xf32> to vector<2xf32>
    %35 = vector.shape_cast %34 : vector<2xf32> to vector<2x1xf32>
    %36 = vector.broadcast %35 : vector<2x1xf32> to vector<2x128xf32>
    %37 = arith.subf %33, %36 : vector<2x128xf32>
    %38 = math.exp %37 : vector<2x128xf32>
    %cst_23 = arith.constant dense<0.000000e+00> : vector<2xf32>
    %39 = vector.multi_reduction <add>, %38, %cst_23 [1] : vector<2x128xf32> to vector<2xf32>
    %40 = vector.shape_cast %39 : vector<2xf32> to vector<2x1xf32>
    %41 = math.log %40 : vector<2x1xf32>
    %42 = vector.broadcast %41 : vector<2x1xf32> to vector<2x128xf32>
    %43 = arith.subf %37, %42 : vector<2x128xf32>
    %c0_24 = arith.constant 0 : index
    %c0_25 = arith.constant 0 : index
    %44 = vector.load %arg10[%c0_24, %c0_25] : memref<2x128xf32, #tpu.memory_space<vmem>>, vector<2x128xf32>
    tpu.vector_store %arg10[%c0_24, %c0_25], %43 {strides = array<i32>} : memref<2x128xf32, #tpu.memory_space<vmem>>, vector<2x128xf32>,
    return
  }
  func.func @transform_0(%arg0: i32) -> (i32, i32) {
    %c0_i32 = arith.constant 0 : i32
    %c0_i32_0 = arith.constant 0 : i32
    return %arg0, %c0_i32 : i32, i32
  }
  func.func @transform_1(%arg0: i32) -> (i32, i32) {
    %c0_i32 = arith.constant 0 : i32
    %c0_i32_0 = arith.constant 0 : i32
    %c0_i32_1 = arith.constant 0 : i32
    return %c0_i32, %c0_i32_0 : i32, i32
  }
  func.func @transform_2(%arg0: i32) -> (i32, i32) {
    %c0_i32 = arith.constant 0 : i32
    %c0_i32_0 = arith.constant 0 : i32
    %c0_i32_1 = arith.constant 0 : i32
    return %c0_i32, %c0_i32_0 : i32, i32
  }
  func.func @transform_3(%arg0: i32) -> (i32, i32) {
    %c0_i32 = arith.constant 0 : i32
    %c0_i32_0 = arith.constant 0 : i32
    %c0_i32_1 = arith.constant 0 : i32
    return %c0_i32, %c0_i32_0 : i32, i32
  }
  func.func @transform_4(%arg0: i32) -> (i32, i32) {
    %c0_i32 = arith.constant 0 : i32
    %c0_i32_0 = arith.constant 0 : i32
    %c0_i32_1 = arith.constant 0 : i32
    return %c0_i32, %c0_i32_0 : i32, i32
  }
  func.func @transform_5(%arg0: i32) -> (i32, i32) {
    %c0_i32 = arith.constant 0 : i32
    %c0_i32_0 = arith.constant 0 : i32
    %c0_i32_1 = arith.constant 0 : i32
    return %c0_i32, %c0_i32_0 : i32, i32
  }
  func.func @transform_6(%arg0: i32) -> (i32, i32) {
    %c0_i32 = arith.constant 0 : i32
    %c0_i32_0 = arith.constant 0 : i32
    %c0_i32_1 = arith.constant 0 : i32
    return %c0_i32, %c0_i32_0 : i32, i32
  }
  func.func @transform_7(%arg0: i32) -> (i32, i32) {
    %c0_i32 = arith.constant 0 : i32
    %c0_i32_0 = arith.constant 0 : i32
    %c0_i32_1 = arith.constant 0 : i32
    return %c0_i32, %c0_i32_0 : i32, i32
  }
  func.func @transform_8(%arg0: i32) -> (i32, i32) {
    %c0_i32 = arith.constant 0 : i32
    %c0_i32_0 = arith.constant 0 : i32
    %c0_i32_1 = arith.constant 0 : i32
    return %c0_i32, %c0_i32_0 : i32, i32
  }
  func.func @transform_9(%arg0: i32) -> (i32, i32) {
    %c0_i32 = arith.constant 0 : i32
    %c0_i32_0 = arith.constant 0 : i32
    return %arg0, %c0_i32 : i32, i32
  }
}

</mosaic_0001>

<llo_original>
// kernel: tpu_custom_call.1
$region0: #{tpu_custom_call.1}
  #allocation0 [shape = 'u32[]', space=smem, size = 0x4, offset = 0x4, fixed_abs, tag = 'smem constant byte address 0x4 - core index']
  #allocation1 [shape = 'u32[144,128]{1,0:T(1,128)}', space=vmem, size = 0x12000, scoped, tag = 'internal scratch']
  %s0 = inlined_call_operand.hbm [shape: f32[2,1024], index: 0, kind: input, shape index: {}]
  %s1 = inlined_call_operand.hbm [shape: bf16[1024,128], index: 1, kind: input, shape index: {}]
  %s2 = inlined_call_operand.vmem [shape: f32[1,128], index: 2, kind: input, shape index: {}]
  %s3 = inlined_call_operand.vmem [shape: f32[1,128], index: 3, kind: input, shape index: {}]
  %s4 = inlined_call_operand.hbm [shape: bf16[128,128], index: 4, kind: input, shape index: {}]
  %s5 = inlined_call_operand.vmem [shape: f32[1,128], index: 5, kind: input, shape index: {}]
  %s6 = inlined_call_operand.vmem [shape: f32[1,128], index: 6, kind: input, shape index: {}]
  %s7 = inlined_call_operand.hbm [shape: bf16[128,128], index: 7, kind: input, shape index: {}]
  %s8 = inlined_call_operand.vmem [shape: f32[1,128], index: 8, kind: input, shape index: {}]
  %s9 = inlined_call_operand.hbm [shape: f32[2,128], index: 9, kind: output, shape index: {}]
  %s10 = sld [smem:[#allocation0]]
  $region62: #{tpu_custom_call.1} parent=0
    _
  %s12 = ssub.s32 1, %s10
  %s13 = scalar_select 0, %s12, %s10
  $region1: #{tpu_custom_call.1} parent=0
    #allocation2 [shape = 'u8[8192]{0}', space=vmem, size = 0x2000, scoped, tag = 'input window, operand 0, single buffered']
    #allocation3 [shape = 's32[1]{0}', space=sflag, size = 0x4, scoped, tag = 'scoped memory for tpu_custom_call.1']
    #allocation4 [shape = 's32[1]{0}', space=sflag, size = 0x4, scoped, tag = 'scoped memory for tpu_custom_call.1']
    #allocation5 [shape = 'u8[262144]{0}', space=vmem, size = 0x40000, scoped, tag = 'input window, operand 1, single buffered']
    #allocation6 [shape = 's32[1]{0}', space=sflag, size = 0x4, scoped, tag = 'scoped memory for tpu_custom_call.1']
    #allocation7 [shape = 'u8[32768]{0}', space=vmem, size = 0x8000, scoped, tag = 'input window, operand 4, single buffered']
    #allocation8 [shape = 'u8[32768]{0}', space=vmem, size = 0x8000, scoped, tag = 'input window, operand 7, single buffered']
    #allocation9 [shape = 's32[1]{0}', space=sflag, size = 0x4, scoped, tag = 'scoped memory for tpu_custom_call.1']
    #allocation10 [shape = 'u8[1024]{0}', space=vmem, size = 0x400, scoped, tag = 'output window, operand 0, single buffered']
    %14 = vsyncpa [#allocation3], 0
    %15 = vsyncpa [#allocation6], 0
    %16 = vsyncpa [#allocation9], 0
    %17 = vsyncpa [#allocation4], 0
    // Predicated region
    $region2: #{tpu_custom_call.1} parent=1 // pred_check
      _
    $region3: #{tpu_custom_call.1} parent=1 // pred_check_branch
      %19 = sbr.rel (0) target = $region5
    $region4: #{tpu_custom_call.1} parent=1 // pred_region
      %s21 = ssub.s32 256, 256
      %22 = vsyncadd [#allocation3], %s21
      %s24 = sshll.u32 [#allocation2], 4
      %s25 = int_to_ptr.vmem [resolvable:$true] %s24
      %27 = dma.hbm_to_vmem [thread:$0]  %s0, 256, %s25, [#allocation3]
    $region5: #{tpu_custom_call.1} parent=1 // pred_fallthru
      _
    // Predicated region
    $region6: #{tpu_custom_call.1} parent=1 // pred_check
      _
    $region7: #{tpu_custom_call.1} parent=1 // pred_check_branch
      %29 = sbr.rel (0) target = $region9
    $region8: #{tpu_custom_call.1} parent=1 // pred_region
      %s31 = ssub.s32 8192, 8192
      %32 = vsyncadd [#allocation6], %s31
      %s33 = sshll.u32 [#allocation5], 4
      %s34 = int_to_ptr.vmem [resolvable:$true] %s33
      %39 = dma.hbm_to_vmem [thread:$0]  %s1, 8192, %s34, [#allocation6], 64, 64, 4
    $region9: #{tpu_custom_call.1} parent=1 // pred_fallthru
      _
    // Predicated region
    $region10: #{tpu_custom_call.1} parent=1 // pred_check
      _
    $region11: #{tpu_custom_call.1} parent=1 // pred_check_branch
      %41 = sbr.rel (0) target = $region13
    $region12: #{tpu_custom_call.1} parent=1 // pred_region
      _
    $region13: #{tpu_custom_call.1} parent=1 // pred_fallthru
      _
    // Predicated region
    $region14: #{tpu_custom_call.1} parent=1 // pred_check
      _
    $region15: #{tpu_custom_call.1} parent=1 // pred_check_branch
      %43 = sbr.rel (0) target = $region17
    $region16: #{tpu_custom_call.1} parent=1 // pred_region
      _
    $region17: #{tpu_custom_call.1} parent=1 // pred_fallthru
      _
    // Predicated region
    $region18: #{tpu_custom_call.1} parent=1 // pred_check
      _
    $region19: #{tpu_custom_call.1} parent=1 // pred_check_branch
      %45 = sbr.rel (0) target = $region21
    $region20: #{tpu_custom_call.1} parent=1 // pred_region
      %s47 = ssub.s32 1024, 1024
      %48 = vsyncadd [#allocation6], %s47
      %s49 = sshll.u32 [#allocation7], 4
      %s50 = int_to_ptr.vmem [resolvable:$true] %s49
      %55 = dma.hbm_to_vmem [thread:$0]  %s4, 1024, %s50, [#allocation6], 64, 64, 4
    $region21: #{tpu_custom_call.1} parent=1 // pred_fallthru
      _
    // Predicated region
    $region22: #{tpu_custom_call.1} parent=1 // pred_check
      _
    $region23: #{tpu_custom_call.1} parent=1 // pred_check_branch
      %57 = sbr.rel (0) target = $region25
    $region24: #{tpu_custom_call.1} parent=1 // pred_region
      _
    $region25: #{tpu_custom_call.1} parent=1 // pred_fallthru
      _
    // Predicated region
    $region26: #{tpu_custom_call.1} parent=1 // pred_check
      _
    $region27: #{tpu_custom_call.1} parent=1 // pred_check_branch
      %59 = sbr.rel (0) target = $region29
    $region28: #{tpu_custom_call.1} parent=1 // pred_region
      _
    $region29: #{tpu_custom_call.1} parent=1 // pred_fallthru
      _
    // Predicated region
    $region30: #{tpu_custom_call.1} parent=1 // pred_check
      _
    $region31: #{tpu_custom_call.1} parent=1 // pred_check_branch
      %61 = sbr.rel (0) target = $region33
    $region32: #{tpu_custom_call.1} parent=1 // pred_region
      %s63 = ssub.s32 1024, 1024
      %64 = vsyncadd [#allocation9], %s63
      %s65 = sshll.u32 [#allocation8], 4
      %s66 = int_to_ptr.vmem [resolvable:$true] %s65
      %71 = dma.hbm_to_vmem [thread:$0]  %s7, 1024, %s66, [#allocation9], 64, 64, 4
    $region33: #{tpu_custom_call.1} parent=1 // pred_fallthru
      _
    // Predicated region
    $region34: #{tpu_custom_call.1} parent=1 // pred_check
      _
    $region35: #{tpu_custom_call.1} parent=1 // pred_check_branch
      %73 = sbr.rel (0) target = $region37
    $region36: #{tpu_custom_call.1} parent=1 // pred_region
      _
    $region37: #{tpu_custom_call.1} parent=1 // pred_fallthru
      _
    // Predicated region
    $region38: #{tpu_custom_call.1} parent=1 // pred_check
      _
    $region39: #{tpu_custom_call.1} parent=1 // pred_check_branch
      %75 = sbr.rel (0) target = $region41
    $region40: #{tpu_custom_call.1} parent=1 // pred_region
      %76 = dma.done [#allocation3], 256
    $region41: #{tpu_custom_call.1} parent=1 // pred_fallthru
      _
    // Predicated region
    $region42: #{tpu_custom_call.1} parent=1 // pred_check
      _
    $region43: #{tpu_custom_call.1} parent=1 // pred_check_branch
      %78 = sbr.rel (0) target = $region45
    $region44: #{tpu_custom_call.1} parent=1 // pred_region
      %79 = dma.done [#allocation6], 8192
    $region45: #{tpu_custom_call.1} parent=1 // pred_fallthru
      _
    // Predicated region
    $region46: #{tpu_custom_call.1} parent=1 // pred_check
      _
    $region47: #{tpu_custom_call.1} parent=1 // pred_check_branch
      %81 = sbr.rel (0) target = $region49
    $region48: #{tpu_custom_call.1} parent=1 // pred_region
      %82 = dma.done [#allocation6], 1024
    $region49: #{tpu_custom_call.1} parent=1 // pred_fallthru
      _
    // Predicated region
    $region50: #{tpu_custom_call.1} parent=1 // pred_check
      _
    $region51: #{tpu_custom_call.1} parent=1 // pred_check_branch
      %84 = sbr.rel (0) target = $region53
    $region52: #{tpu_custom_call.1} parent=1 // pred_region
      %85 = dma.done [#allocation9], 1024
    $region53: #{tpu_custom_call.1} parent=1 // pred_fallthru
      _
    %v87 = vld [vmem:[#allocation2] sm:$0xff]
    %v88 = vld [vmem:[#allocation2 + $0x8] sm:$0xff]
    %v91 = vcombine.high %v87, %v87
    %v93 = vunpack.c.l.s4 1983009808
    %v94 = vunpack.c.0.s8 %v93
    %v95 = vlaneseq
    %v96 = vshrl.u32 %v95, 7
    %v97 = vsub.s32 %v94, %v96
    %v98 = vrot.slane %v87, %v97
    %v100 = vunpack.c.l.s4 1983009808
    %v101 = vunpack.c.0.s8 %v100
    %v102 = vlaneseq
    %v103 = vshrl.u32 %v102, 7
    %v104 = vsub.s32 %v101, %v103
    %v105 = vrot.slane %v91, %v104
    %v106 = vcombine.high %v98, %v98
    %v107 = vcombine.high %v105, %v105
    %v108 = vcombine.high %v88, %v88
    %v110 = vunpack.c.l.s4 1983009808
    %v111 = vunpack.c.0.s8 %v110
    %v112 = vlaneseq
    %v113 = vshrl.u32 %v112, 7
    %v114 = vsub.s32 %v111, %v113
    %v115 = vrot.slane %v88, %v114
    %v117 = vunpack.c.l.s4 1983009808
    %v118 = vunpack.c.0.s8 %v117
    %v119 = vlaneseq
    %v120 = vshrl.u32 %v119, 7
    %v121 = vsub.s32 %v118, %v120
    %v122 = vrot.slane %v108, %v121
    %v123 = vcombine.high %v115, %v115
    %v124 = vcombine.high %v122, %v122
    %v133 = vpack.c.bf16 %v98, %v98
    %v134 = vpack.c.bf16 %v106, %v106
    %v135 = vpack.c.bf16 %v105, %v105
    %v136 = vpack.c.bf16 %v107, %v107
    %v137 = vpack.c.bf16 %v115, %v115
    %v138 = vpack.c.bf16 %v123, %v123
    %v139 = vpack.c.bf16 %v122, %v122
    %v140 = vpack.c.bf16 %v124, %v124
    %v141 = vld [vmem:[#allocation5] sm:$0xf]
    %v142 = vld [vmem:[#allocation5 + $0x4] sm:$0xf]
    %v143 = vld [vmem:[#allocation5 + $0x8] sm:$0xf]
    %v144 = vld [vmem:[#allocation5 + $0xc] sm:$0xf]
    %v145 = vld [vmem:[#allocation5 + $0x10] sm:$0xf]
    %v146 = vld [vmem:[#allocation5 + $0x14] sm:$0xf]
    %v147 = vld [vmem:[#allocation5 + $0x18] sm:$0xf]
    %v148 = vld [vmem:[#allocation5 + $0x1c] sm:$0xf]
    %v149 = vld [vmem:[#allocation5 + $0x20] sm:$0xf]
    %v150 = vld [vmem:[#allocation5 + $0x24] sm:$0xf]
    %v151 = vld [vmem:[#allocation5 + $0x28] sm:$0xf]
    %v152 = vld [vmem:[#allocation5 + $0x2c] sm:$0xf]
    %v153 = vld [vmem:[#allocation5 + $0x30] sm:$0xf]
    %v154 = vld [vmem:[#allocation5 + $0x34] sm:$0xf]
    %v155 = vld [vmem:[#allocation5 + $0x38] sm:$0xf]
    %v156 = vld [vmem:[#allocation5 + $0x3c] sm:$0xf]
    %v157 = vld [vmem:[#allocation5 + $0x40] sm:$0xf]
    %v158 = vld [vmem:[#allocation5 + $0x44] sm:$0xf]
    %v159 = vld [vmem:[#allocation5 + $0x48] sm:$0xf]
    %v160 = vld [vmem:[#allocation5 + $0x4c] sm:$0xf]
    %v161 = vld [vmem:[#allocation5 + $0x50] sm:$0xf]
    %v162 = vld [vmem:[#allocation5 + $0x54] sm:$0xf]
    %v163 = vld [vmem:[#allocation5 + $0x58] sm:$0xf]
    %v164 = vld [vmem:[#allocation5 + $0x5c] sm:$0xf]
    %v165 = vld [vmem:[#allocation5 + $0x60] sm:$0xf]
    %v166 = vld [vmem:[#allocation5 + $0x64] sm:$0xf]
    %v167 = vld [vmem:[#allocation5 + $0x68] sm:$0xf]
    %v168 = vld [vmem:[#allocation5 + $0x6c] sm:$0xf]
    %v169 = vld [vmem:[#allocation5 + $0x70] sm:$0xf]
    %v170 = vld [vmem:[#allocation5 + $0x74] sm:$0xf]
    %v171 = vld [vmem:[#allocation5 + $0x78] sm:$0xf]
    %v172 = vld [vmem:[#allocation5 + $0x7c] sm:$0xf]
    %v173 = vld [vmem:[#allocation5 + $0x80] sm:$0xf]
    %v174 = vld [vmem:[#allocation5 + $0x84] sm:$0xf]
    %v175 = vld [vmem:[#allocation5 + $0x88] sm:$0xf]
    %v176 = vld [vmem:[#allocation5 + $0x8c] sm:$0xf]
    %v177 = vld [vmem:[#allocation5 + $0x90] sm:$0xf]
    %v178 = vld [vmem:[#allocation5 + $0x94] sm:$0xf]
    %v179 = vld [vmem:[#allocation5 + $0x98] sm:$0xf]
    %v180 = vld [vmem:[#allocation5 + $0x9c] sm:$0xf]
    %v181 = vld [vmem:[#allocation5 + $0xa0] sm:$0xf]
    %v182 = vld [vmem:[#allocation5 + $0xa4] sm:$0xf]
    %v183 = vld [vmem:[#allocation5 + $0xa8] sm:$0xf]
    %v184 = vld [vmem:[#allocation5 + $0xac] sm:$0xf]
    %v185 = vld [vmem:[#allocation5 + $0xb0] sm:$0xf]
    %v186 = vld [vmem:[#allocation5 + $0xb4] sm:$0xf]
    %v187 = vld [vmem:[#allocation5 + $0xb8] sm:$0xf]
    %v188 = vld [vmem:[#allocation5 + $0xbc] sm:$0xf]
    %v189 = vld [vmem:[#allocation5 + $0xc0] sm:$0xf]
    %v190 = vld [vmem:[#allocation5 + $0xc4] sm:$0xf]
    %v191 = vld [vmem:[#allocation5 + $0xc8] sm:$0xf]
    %v192 = vld [vmem:[#allocation5 + $0xcc] sm:$0xf]
    %v193 = vld [vmem:[#allocation5 + $0xd0] sm:$0xf]
    %v194 = vld [vmem:[#allocation5 + $0xd4] sm:$0xf]
    %v195 = vld [vmem:[#allocation5 + $0xd8] sm:$0xf]
    %v196 = vld [vmem:[#allocation5 + $0xdc] sm:$0xf]
    %v197 = vld [vmem:[#allocation5 + $0xe0] sm:$0xf]
    %v198 = vld [vmem:[#allocation5 + $0xe4] sm:$0xf]
    %v199 = vld [vmem:[#allocation5 + $0xe8] sm:$0xf]
    %v200 = vld [vmem:[#allocation5 + $0xec] sm:$0xf]
    %v201 = vld [vmem:[#allocation5 + $0xf0] sm:$0xf]
    %v202 = vld [vmem:[#allocation5 + $0xf4] sm:$0xf]
    %v203 = vld [vmem:[#allocation5 + $0xf8] sm:$0xf]
    %v204 = vld [vmem:[#allocation5 + $0xfc] sm:$0xf]
    %v205 = vld [vmem:[#allocation5 + $0x100] sm:$0xf]
    %v206 = vld [vmem:[#allocation5 + $0x104] sm:$0xf]
    %v207 = vld [vmem:[#allocation5 + $0x108] sm:$0xf]
    %v208 = vld [vmem:[#allocation5 + $0x10c] sm:$0xf]
    %v209 = vld [vmem:[#allocation5 + $0x110] sm:$0xf]
    %v210 = vld [vmem:[#allocation5 + $0x114] sm:$0xf]
    %v211 = vld [vmem:[#allocation5 + $0x118] sm:$0xf]
    %v212 = vld [vmem:[#allocation5 + $0x11c] sm:$0xf]
    %v213 = vld [vmem:[#allocation5 + $0x120] sm:$0xf]
    %v214 = vld [vmem:[#allocation5 + $0x124] sm:$0xf]
    %v215 = vld [vmem:[#allocation5 + $0x128] sm:$0xf]
    %v216 = vld [vmem:[#allocation5 + $0x12c] sm:$0xf]
    %v217 = vld [vmem:[#allocation5 + $0x130] sm:$0xf]
    %v218 = vld [vmem:[#allocation5 + $0x134] sm:$0xf]
    %v219 = vld [vmem:[#allocation5 + $0x138] sm:$0xf]
    %v220 = vld [vmem:[#allocation5 + $0x13c] sm:$0xf]
    %v221 = vld [vmem:[#allocation5 + $0x140] sm:$0xf]
    %v222 = vld [vmem:[#allocation5 + $0x144] sm:$0xf]
    %v223 = vld [vmem:[#allocation5 + $0x148] sm:$0xf]
    %v224 = vld [vmem:[#allocation5 + $0x14c] sm:$0xf]
    %v225 = vld [vmem:[#allocation5 + $0x150] sm:$0xf]
    %v226 = vld [vmem:[#allocation5 + $0x154] sm:$0xf]
    %v227 = vld [vmem:[#allocation5 + $0x158] sm:$0xf]
    %v228 = vld [vmem:[#allocation5 + $0x15c] sm:$0xf]
    %v229 = vld [vmem:[#allocation5 + $0x160] sm:$0xf]
    %v230 = vld [vmem:[#allocation5 + $0x164] sm:$0xf]
    %v231 = vld [vmem:[#allocation5 + $0x168] sm:$0xf]
    %v232 = vld [vmem:[#allocation5 + $0x16c] sm:$0xf]
    %v233 = vld [vmem:[#allocation5 + $0x170] sm:$0xf]
    %v234 = vld [vmem:[#allocation5 + $0x174] sm:$0xf]
    %v235 = vld [vmem:[#allocation5 + $0x178] sm:$0xf]
    %v236 = vld [vmem:[#allocation5 + $0x17c] sm:$0xf]
    %v237 = vld [vmem:[#allocation5 + $0x180] sm:$0xf]
    %v238 = vld [vmem:[#allocation5 + $0x184] sm:$0xf]
    %v239 = vld [vmem:[#allocation5 + $0x188] sm:$0xf]
    %v240 = vld [vmem:[#allocation5 + $0x18c] sm:$0xf]
    %v241 = vld [vmem:[#allocation5 + $0x190] sm:$0xf]
    %v242 = vld [vmem:[#allocation5 + $0x194] sm:$0xf]
    %v243 = vld [vmem:[#allocation5 + $0x198] sm:$0xf]
    %v244 = vld [vmem:[#allocation5 + $0x19c] sm:$0xf]
    %v245 = vld [vmem:[#allocation5 + $0x1a0] sm:$0xf]
    %v246 = vld [vmem:[#allocation5 + $0x1a4] sm:$0xf]
    %v247 = vld [vmem:[#allocation5 + $0x1a8] sm:$0xf]
    %v248 = vld [vmem:[#allocation5 + $0x1ac] sm:$0xf]
    %v249 = vld [vmem:[#allocation5 + $0x1b0] sm:$0xf]
    %v250 = vld [vmem:[#allocation5 + $0x1b4] sm:$0xf]
    %v251 = vld [vmem:[#allocation5 + $0x1b8] sm:$0xf]
    %v252 = vld [vmem:[#allocation5 + $0x1bc] sm:$0xf]
    %v253 = vld [vmem:[#allocation5 + $0x1c0] sm:$0xf]
    %v254 = vld [vmem:[#allocation5 + $0x1c4] sm:$0xf]
    %v255 = vld [vmem:[#allocation5 + $0x1c8] sm:$0xf]
    %v256 = vld [vmem:[#allocation5 + $0x1cc] sm:$0xf]
    %v257 = vld [vmem:[#allocation5 + $0x1d0] sm:$0xf]
    %v258 = vld [vmem:[#allocation5 + $0x1d4] sm:$0xf]
    %v259 = vld [vmem:[#allocation5 + $0x1d8] sm:$0xf]
    %v260 = vld [vmem:[#allocation5 + $0x1dc] sm:$0xf]
    %v261 = vld [vmem:[#allocation5 + $0x1e0] sm:$0xf]
    %v262 = vld [vmem:[#allocation5 + $0x1e4] sm:$0xf]
    %v263 = vld [vmem:[#allocation5 + $0x1e8] sm:$0xf]
    %v264 = vld [vmem:[#allocation5 + $0x1ec] sm:$0xf]
    %v265 = vld [vmem:[#allocation5 + $0x1f0] sm:$0xf]
    %v266 = vld [vmem:[#allocation5 + $0x1f4] sm:$0xf]
    %v267 = vld [vmem:[#allocation5 + $0x1f8] sm:$0xf]
    %v268 = vld [vmem:[#allocation5 + $0x1fc] sm:$0xf]
    %v397 = vunpack.c.l.b16 %v141
    %v398 = vunpack.c.l.b16 %v142
    %v399 = vunpack.c.l.b16 %v143
    %v400 = vunpack.c.l.b16 %v144
    %v401 = vunpack.c.l.b16 %v145
    %v402 = vunpack.c.l.b16 %v146
    %v403 = vunpack.c.l.b16 %v147
    %v404 = vunpack.c.l.b16 %v148
    %v405 = vunpack.c.l.b16 %v149
    %v406 = vunpack.c.l.b16 %v150
    %v407 = vunpack.c.l.b16 %v151
    %v408 = vunpack.c.l.b16 %v152
    %v409 = vunpack.c.l.b16 %v153
    %v410 = vunpack.c.l.b16 %v154
    %v411 = vunpack.c.l.b16 %v155
    %v412 = vunpack.c.l.b16 %v156
    %v413 = vunpack.c.l.b16 %v157
    %v414 = vunpack.c.l.b16 %v158
    %v415 = vunpack.c.l.b16 %v159
    %v416 = vunpack.c.l.b16 %v160
    %v417 = vunpack.c.l.b16 %v161
    %v418 = vunpack.c.l.b16 %v162
    %v419 = vunpack.c.l.b16 %v163
    %v420 = vunpack.c.l.b16 %v164
    %v421 = vunpack.c.l.b16 %v165
    %v422 = vunpack.c.l.b16 %v166
    %v423 = vunpack.c.l.b16 %v167
    %v424 = vunpack.c.l.b16 %v168
    %v425 = vunpack.c.l.b16 %v169
    %v426 = vunpack.c.l.b16 %v170
    %v427 = vunpack.c.l.b16 %v171
    %v428 = vunpack.c.l.b16 %v172
    %v429 = vunpack.c.l.b16 %v173
    %v430 = vunpack.c.l.b16 %v174
    %v431 = vunpack.c.l.b16 %v175
    %v432 = vunpack.c.l.b16 %v176
    %v433 = vunpack.c.l.b16 %v177
    %v434 = vunpack.c.l.b16 %v178
    %v435 = vunpack.c.l.b16 %v179
    %v436 = vunpack.c.l.b16 %v180
    %v437 = vunpack.c.l.b16 %v181
    %v438 = vunpack.c.l.b16 %v182
    %v439 = vunpack.c.l.b16 %v183
    %v440 = vunpack.c.l.b16 %v184
    %v441 = vunpack.c.l.b16 %v185
    %v442 = vunpack.c.l.b16 %v186
    %v443 = vunpack.c.l.b16 %v187
    %v444 = vunpack.c.l.b16 %v188
    %v445 = vunpack.c.l.b16 %v189
    %v446 = vunpack.c.l.b16 %v190
    %v447 = vunpack.c.l.b16 %v191
    %v448 = vunpack.c.l.b16 %v192
    %v449 = vunpack.c.l.b16 %v193
    %v450 = vunpack.c.l.b16 %v194
    %v451 = vunpack.c.l.b16 %v195
    %v452 = vunpack.c.l.b16 %v196
    %v453 = vunpack.c.l.b16 %v197
    %v454 = vunpack.c.l.b16 %v198
    %v455 = vunpack.c.l.b16 %v199
    %v456 = vunpack.c.l.b16 %v200
    %v457 = vunpack.c.l.b16 %v201
    %v458 = vunpack.c.l.b16 %v202
    %v459 = vunpack.c.l.b16 %v203
    %v460 = vunpack.c.l.b16 %v204
    %v461 = vunpack.c.l.b16 %v205
    %v462 = vunpack.c.l.b16 %v206
    %v463 = vunpack.c.l.b16 %v207
    %v464 = vunpack.c.l.b16 %v208
    %v465 = vunpack.c.l.b16 %v209
    %v466 = vunpack.c.l.b16 %v210
    %v467 = vunpack.c.l.b16 %v211
    %v468 = vunpack.c.l.b16 %v212
    %v469 = vunpack.c.l.b16 %v213
    %v470 = vunpack.c.l.b16 %v214
    %v471 = vunpack.c.l.b16 %v215
    %v472 = vunpack.c.l.b16 %v216
    %v473 = vunpack.c.l.b16 %v217
    %v474 = vunpack.c.l.b16 %v218
    %v475 = vunpack.c.l.b16 %v219
    %v476 = vunpack.c.l.b16 %v220
    %v477 = vunpack.c.l.b16 %v221
    %v478 = vunpack.c.l.b16 %v222
    %v479 = vunpack.c.l.b16 %v223
    %v480 = vunpack.c.l.b16 %v224
    %v481 = vunpack.c.l.b16 %v225
    %v482 = vunpack.c.l.b16 %v226
    %v483 = vunpack.c.l.b16 %v227
    %v484 = vunpack.c.l.b16 %v228
    %v485 = vunpack.c.l.b16 %v229
    %v486 = vunpack.c.l.b16 %v230
    %v487 = vunpack.c.l.b16 %v231
    %v488 = vunpack.c.l.b16 %v232
    %v489 = vunpack.c.l.b16 %v233
    %v490 = vunpack.c.l.b16 %v234
    %v491 = vunpack.c.l.b16 %v235
    %v492 = vunpack.c.l.b16 %v236
    %v493 = vunpack.c.l.b16 %v237
    %v494 = vunpack.c.l.b16 %v238
    %v495 = vunpack.c.l.b16 %v239
    %v496 = vunpack.c.l.b16 %v240
    %v497 = vunpack.c.l.b16 %v241
    %v498 = vunpack.c.l.b16 %v242
    %v499 = vunpack.c.l.b16 %v243
    %v500 = vunpack.c.l.b16 %v244
    %v501 = vunpack.c.l.b16 %v245
    %v502 = vunpack.c.l.b16 %v246
    %v503 = vunpack.c.l.b16 %v247
    %v504 = vunpack.c.l.b16 %v248
    %v505 = vunpack.c.l.b16 %v249
    %v506 = vunpack.c.l.b16 %v250
    %v507 = vunpack.c.l.b16 %v251
    %v508 = vunpack.c.l.b16 %v252
    %v509 = vunpack.c.l.b16 %v253
    %v510 = vunpack.c.l.b16 %v254
    %v511 = vunpack.c.l.b16 %v255
    %v512 = vunpack.c.l.b16 %v256
    %v513 = vunpack.c.l.b16 %v257
    %v514 = vunpack.c.l.b16 %v258
    %v515 = vunpack.c.l.b16 %v259
    %v516 = vunpack.c.l.b16 %v260
    %v517 = vunpack.c.l.b16 %v261
    %v518 = vunpack.c.l.b16 %v262
    %v519 = vunpack.c.l.b16 %v263
    %v520 = vunpack.c.l.b16 %v264
    %v521 = vunpack.c.l.b16 %v265
    %v522 = vunpack.c.l.b16 %v266
    %v523 = vunpack.c.l.b16 %v267
    %v524 = vunpack.c.l.b16 %v268
    %v525 = vpack.c.b16 %v398, %v397
    %v526 = vpack.c.b16 %v400, %v399
    %v527 = vpack.c.b16 %v402, %v401
    %v528 = vpack.c.b16 %v404, %v403
    %v529 = vpack.c.b16 %v406, %v405
    %v530 = vpack.c.b16 %v408, %v407
    %v531 = vpack.c.b16 %v410, %v409
    %v532 = vpack.c.b16 %v412, %v411
    %v533 = vpack.c.b16 %v414, %v413
    %v534 = vpack.c.b16 %v416, %v415
    %v535 = vpack.c.b16 %v418, %v417
    %v536 = vpack.c.b16 %v420, %v419
    %v537 = vpack.c.b16 %v422, %v421
    %v538 = vpack.c.b16 %v424, %v423
    %v539 = vpack.c.b16 %v426, %v425
    %v540 = vpack.c.b16 %v428, %v427
    %v541 = vpack.c.b16 %v430, %v429
    %v542 = vpack.c.b16 %v432, %v431
    %v543 = vpack.c.b16 %v434, %v433
    %v544 = vpack.c.b16 %v436, %v435
    %v545 = vpack.c.b16 %v438, %v437
    %v546 = vpack.c.b16 %v440, %v439
    %v547 = vpack.c.b16 %v442, %v441
    %v548 = vpack.c.b16 %v444, %v443
    %v549 = vpack.c.b16 %v446, %v445
    %v550 = vpack.c.b16 %v448, %v447
    %v551 = vpack.c.b16 %v450, %v449
    %v552 = vpack.c.b16 %v452, %v451
    %v553 = vpack.c.b16 %v454, %v453
    %v554 = vpack.c.b16 %v456, %v455
    %v555 = vpack.c.b16 %v458, %v457
    %v556 = vpack.c.b16 %v460, %v459
    %v557 = vpack.c.b16 %v462, %v461
    %v558 = vpack.c.b16 %v464, %v463
    %v559 = vpack.c.b16 %v466, %v465
    %v560 = vpack.c.b16 %v468, %v467
    %v561 = vpack.c.b16 %v470, %v469
    %v562 = vpack.c.b16 %v472, %v471
    %v563 = vpack.c.b16 %v474, %v473
    %v564 = vpack.c.b16 %v476, %v475
    %v565 = vpack.c.b16 %v478, %v477
    %v566 = vpack.c.b16 %v480, %v479
    %v567 = vpack.c.b16 %v482, %v481
    %v568 = vpack.c.b16 %v484, %v483
    %v569 = vpack.c.b16 %v486, %v485
    %v570 = vpack.c.b16 %v488, %v487
    %v571 = vpack.c.b16 %v490, %v489
    %v572 = vpack.c.b16 %v492, %v491
    %v573 = vpack.c.b16 %v494, %v493
    %v574 = vpack.c.b16 %v496, %v495
    %v575 = vpack.c.b16 %v498, %v497
    %v576 = vpack.c.b16 %v500, %v499
    %v577 = vpack.c.b16 %v502, %v501
    %v578 = vpack.c.b16 %v504, %v503
    %v579 = vpack.c.b16 %v506, %v505
    %v580 = vpack.c.b16 %v508, %v507
    %v581 = vpack.c.b16 %v510, %v509
    %v582 = vpack.c.b16 %v512, %v511
    %v583 = vpack.c.b16 %v514, %v513
    %v584 = vpack.c.b16 %v516, %v515
    %v585 = vpack.c.b16 %v518, %v517
    %v586 = vpack.c.b16 %v520, %v519
    %v587 = vpack.c.b16 %v522, %v521
    %v588 = vpack.c.b16 %v524, %v523
    %653 = vmatprep.subr.bf16.mxu0 0
    %654 = vmatpush1.bf16.msra.mxu0 %v525
    %655 = vmatprep.subr.bf16.mxu0 0
    %656 = vmatpush1.bf16.msra.mxu0 %v526
    %657 = vmatprep.subr.bf16.mxu0 0
    %658 = vmatpush1.bf16.msra.mxu0 %v527
    %659 = vmatprep.subr.bf16.mxu0 0
    %660 = vmatpush1.bf16.msra.mxu0 %v528
    %661 = vmatprep.subr.bf16.mxu0 0
    %662 = vmatpush1.bf16.msra.mxu0 %v529
    %663 = vmatprep.subr.bf16.mxu0 0
    %664 = vmatpush1.bf16.msra.mxu0 %v530
    %665 = vmatprep.subr.bf16.mxu0 0
    %666 = vmatpush1.bf16.msra.mxu0 %v531
    %667 = vmatprep.subr.bf16.mxu0 0
    %668 = vmatpush1.bf16.msra.mxu0 %v532
    %669 = vmatprep.subr.bf16.mxu0 0
    %670 = vmatpush1.bf16.msra.mxu0 %v533
    %671 = vmatprep.subr.bf16.mxu0 0
    %672 = vmatpush1.bf16.msra.mxu0 %v534
    %673 = vmatprep.subr.bf16.mxu0 0
    %674 = vmatpush1.bf16.msra.mxu0 %v535
    %675 = vmatprep.subr.bf16.mxu0 0
    %676 = vmatpush1.bf16.msra.mxu0 %v536
    %677 = vmatprep.subr.bf16.mxu0 0
    %678 = vmatpush1.bf16.msra.mxu0 %v537
    %679 = vmatprep.subr.bf16.mxu0 0
    %680 = vmatpush1.bf16.msra.mxu0 %v538
    %681 = vmatprep.subr.bf16.mxu0 0
    %682 = vmatpush1.bf16.msra.mxu0 %v539
    %683 = vmatprep.subr.bf16.mxu0 0
    %684 = vmatpush1.bf16.msra.mxu0 %v540
    %685 = vmatprep.mubr.bf16.mxu0 %v134
    %686 = vmatmul.mubr.bf16.gmra.mrb[0].mxu0 %v133
    %v687 = vpop.f32.mrb[0].mxu0
    %v688 = vadd.f32 0.0, %v687
    %v689 = vpop.f32.mrb[0].mxu0
    %v690 = vpop.f32.mrb[0].mxu0
    %v691 = vpop.f32.mrb[0].mxu0
    %692 = vdwg.mxu0
    %693 = vmatprep.subr.bf16.mxu0 0
    %694 = vmatpush1.bf16.msra.mxu0 %v541
    %695 = vmatprep.subr.bf16.mxu0 0
    %696 = vmatpush1.bf16.msra.mxu0 %v542
    %697 = vmatprep.subr.bf16.mxu0 0
    %698 = vmatpush1.bf16.msra.mxu0 %v543
    %699 = vmatprep.subr.bf16.mxu0 0
    %700 = vmatpush1.bf16.msra.mxu0 %v544
    %701 = vmatprep.subr.bf16.mxu0 0
    %702 = vmatpush1.bf16.msra.mxu0 %v545
    %703 = vmatprep.subr.bf16.mxu0 0
    %704 = vmatpush1.bf16.msra.mxu0 %v546
    %705 = vmatprep.subr.bf16.mxu0 0
    %706 = vmatpush1.bf16.msra.mxu0 %v547
    %707 = vmatprep.subr.bf16.mxu0 0
    %708 = vmatpush1.bf16.msra.mxu0 %v548
    %709 = vmatprep.subr.bf16.mxu0 0
    %710 = vmatpush1.bf16.msra.mxu0 %v549
    %711 = vmatprep.subr.bf16.mxu0 0
    %712 = vmatpush1.bf16.msra.mxu0 %v550
    %713 = vmatprep.subr.bf16.mxu0 0
    %714 = vmatpush1.bf16.msra.mxu0 %v551
    %715 = vmatprep.subr.bf16.mxu0 0
    %716 = vmatpush1.bf16.msra.mxu0 %v552
    %717 = vmatprep.subr.bf16.mxu0 0
    %718 = vmatpush1.bf16.msra.mxu0 %v553
    %719 = vmatprep.subr.bf16.mxu0 0
    %720 = vmatpush1.bf16.msra.mxu0 %v554
    %721 = vmatprep.subr.bf16.mxu0 0
    %722 = vmatpush1.bf16.msra.mxu0 %v555
    %723 = vmatprep.subr.bf16.mxu0 0
    %724 = vmatpush1.bf16.msra.mxu0 %v556
    %725 = vmatprep.mubr.bf16.mxu0 %v136
    %726 = vmatmul.mubr.bf16.gmra.mrb[0].mxu0 %v135
    %v727 = vpop.f32.mrb[0].mxu0
    %v728 = vadd.f32 %v688, %v727
    %v729 = vpop.f32.mrb[0].mxu0
    %v730 = vpop.f32.mrb[0].mxu0
    %v731 = vpop.f32.mrb[0].mxu0
    %732 = vdwg.mxu0
    %733 = vmatprep.subr.bf16.mxu0 0
    %734 = vmatpush1.bf16.msra.mxu0 %v557
    %735 = vmatprep.subr.bf16.mxu0 0
    %736 = vmatpush1.bf16.msra.mxu0 %v558
    %737 = vmatprep.subr.bf16.mxu0 0
    %738 = vmatpush1.bf16.msra.mxu0 %v559
    %739 = vmatprep.subr.bf16.mxu0 0
    %740 = vmatpush1.bf16.msra.mxu0 %v560
    %741 = vmatprep.subr.bf16.mxu0 0
    %742 = vmatpush1.bf16.msra.mxu0 %v561
    %743 = vmatprep.subr.bf16.mxu0 0
    %744 = vmatpush1.bf16.msra.mxu0 %v562
    %745 = vmatprep.subr.bf16.mxu0 0
    %746 = vmatpush1.bf16.msra.mxu0 %v563
    %747 = vmatprep.subr.bf16.mxu0 0
    %748 = vmatpush1.bf16.msra.mxu0 %v564
    %749 = vmatprep.subr.bf16.mxu0 0
    %750 = vmatpush1.bf16.msra.mxu0 %v565
    %751 = vmatprep.subr.bf16.mxu0 0
    %752 = vmatpush1.bf16.msra.mxu0 %v566
    %753 = vmatprep.subr.bf16.mxu0 0
    %754 = vmatpush1.bf16.msra.mxu0 %v567
    %755 = vmatprep.subr.bf16.mxu0 0
    %756 = vmatpush1.bf16.msra.mxu0 %v568
    %757 = vmatprep.subr.bf16.mxu0 0
    %758 = vmatpush1.bf16.msra.mxu0 %v569
    %759 = vmatprep.subr.bf16.mxu0 0
    %760 = vmatpush1.bf16.msra.mxu0 %v570
    %761 = vmatprep.subr.bf16.mxu0 0
    %762 = vmatpush1.bf16.msra.mxu0 %v571
    %763 = vmatprep.subr.bf16.mxu0 0
    %764 = vmatpush1.bf16.msra.mxu0 %v572
    %765 = vmatprep.mubr.bf16.mxu0 %v138
    %766 = vmatmul.mubr.bf16.gmra.mrb[0].mxu0 %v137
    %v767 = vpop.f32.mrb[0].mxu0
    %v768 = vadd.f32 %v728, %v767
    %v769 = vpop.f32.mrb[0].mxu0
    %v770 = vpop.f32.mrb[0].mxu0
    %v771 = vpop.f32.mrb[0].mxu0
    %772 = vdwg.mxu0
    %773 = vmatprep.subr.bf16.mxu0 0
    %774 = vmatpush1.bf16.msra.mxu0 %v573
    %775 = vmatprep.subr.bf16.mxu0 0
    %776 = vmatpush1.bf16.msra.mxu0 %v574
    %777 = vmatprep.subr.bf16.mxu0 0
    %778 = vmatpush1.bf16.msra.mxu0 %v575
    %779 = vmatprep.subr.bf16.mxu0 0
    %780 = vmatpush1.bf16.msra.mxu0 %v576
    %781 = vmatprep.subr.bf16.mxu0 0
    %782 = vmatpush1.bf16.msra.mxu0 %v577
    %783 = vmatprep.subr.bf16.mxu0 0
    %784 = vmatpush1.bf16.msra.mxu0 %v578
    %785 = vmatprep.subr.bf16.mxu0 0
    %786 = vmatpush1.bf16.msra.mxu0 %v579
    %787 = vmatprep.subr.bf16.mxu0 0
    %788 = vmatpush1.bf16.msra.mxu0 %v580
    %789 = vmatprep.subr.bf16.mxu0 0
    %790 = vmatpush1.bf16.msra.mxu0 %v581
    %791 = vmatprep.subr.bf16.mxu0 0
    %792 = vmatpush1.bf16.msra.mxu0 %v582
    %793 = vmatprep.subr.bf16.mxu0 0
    %794 = vmatpush1.bf16.msra.mxu0 %v583
    %795 = vmatprep.subr.bf16.mxu0 0
    %796 = vmatpush1.bf16.msra.mxu0 %v584
    %797 = vmatprep.subr.bf16.mxu0 0
    %798 = vmatpush1.bf16.msra.mxu0 %v585
    %799 = vmatprep.subr.bf16.mxu0 0
    %800 = vmatpush1.bf16.msra.mxu0 %v586
    %801 = vmatprep.subr.bf16.mxu0 0
    %802 = vmatpush1.bf16.msra.mxu0 %v587
    %803 = vmatprep.subr.bf16.mxu0 0
    %804 = vmatpush1.bf16.msra.mxu0 %v588
    %805 = vmatprep.mubr.bf16.mxu0 %v140
    %806 = vmatmul.mubr.bf16.gmra.mrb[0].mxu0 %v139
    %v807 = vpop.f32.mrb[0].mxu0
    %v808 = vadd.f32 %v768, %v807
    %v809 = vpop.f32.mrb[0].mxu0
    %v810 = vpop.f32.mrb[0].mxu0
    %v811 = vpop.f32.mrb[0].mxu0
    %812 = vdwg.mxu0
    %v813 = vld [vmem:[%s2] sm:$0x1]
    %v815 = vlaneseq
    %v816 = vshrl.u32 %v815, 7
    %v817 = vsub.s32 0, %v816
    %v818 = vrot.slane %v813, %v817
    %v820 = vmul.f32 %v808, %v818
    %v821 = vld [vmem:[%s3] sm:$0x1]
    %v823 = vlaneseq
    %v824 = vshrl.u32 %v823, 7
    %v825 = vsub.s32 0, %v824
    %v826 = vrot.slane %v821, %v825
    %v828 = vadd.f32 %v820, %v826
    %v829 = vmax.f32 %v828, 0.0
    %v830 = vpack.c.bf16 %v829, %v829
    %v831 = vld [vmem:[#allocation7] sm:$0xf]
    %v832 = vld [vmem:[#allocation7 + $0x4] sm:$0xf]
    %v833 = vld [vmem:[#allocation7 + $0x8] sm:$0xf]
    %v834 = vld [vmem:[#allocation7 + $0xc] sm:$0xf]
    %v835 = vld [vmem:[#allocation7 + $0x10] sm:$0xf]
    %v836 = vld [vmem:[#allocation7 + $0x14] sm:$0xf]
    %v837 = vld [vmem:[#allocation7 + $0x18] sm:$0xf]
    %v838 = vld [vmem:[#allocation7 + $0x1c] sm:$0xf]
    %v839 = vld [vmem:[#allocation7 + $0x20] sm:$0xf]
    %v840 = vld [vmem:[#allocation7 + $0x24] sm:$0xf]
    %v841 = vld [vmem:[#allocation7 + $0x28] sm:$0xf]
    %v842 = vld [vmem:[#allocation7 + $0x2c] sm:$0xf]
    %v843 = vld [vmem:[#allocation7 + $0x30] sm:$0xf]
    %v844 = vld [vmem:[#allocation7 + $0x34] sm:$0xf]
    %v845 = vld [vmem:[#allocation7 + $0x38] sm:$0xf]
    %v846 = vld [vmem:[#allocation7 + $0x3c] sm:$0xf]
    %v863 = vunpack.c.l.b16 %v831
    %v864 = vunpack.c.l.b16 %v832
    %v865 = vunpack.c.l.b16 %v833
    %v866 = vunpack.c.l.b16 %v834
    %v867 = vunpack.c.l.b16 %v835
    %v868 = vunpack.c.l.b16 %v836
    %v869 = vunpack.c.l.b16 %v837
    %v870 = vunpack.c.l.b16 %v838
    %v871 = vunpack.c.l.b16 %v839
    %v872 = vunpack.c.l.b16 %v840
    %v873 = vunpack.c.l.b16 %v841
    %v874 = vunpack.c.l.b16 %v842
    %v875 = vunpack.c.l.b16 %v843
    %v876 = vunpack.c.l.b16 %v844
    %v877 = vunpack.c.l.b16 %v845
    %v878 = vunpack.c.l.b16 %v846
    %v879 = vpack.c.b16 %v864, %v863
    %v880 = vpack.c.b16 %v866, %v865
    %v881 = vpack.c.b16 %v868, %v867
    %v882 = vpack.c.b16 %v870, %v869
    %v883 = vpack.c.b16 %v872, %v871
    %v884 = vpack.c.b16 %v874, %v873
    %v885 = vpack.c.b16 %v876, %v875
    %v886 = vpack.c.b16 %v878, %v877
    %895 = vmatprep.subr.bf16.mxu0 0
    %896 = vmatpush1.bf16.msra.mxu0 %v879
    %897 = vmatprep.subr.bf16.mxu0 0
    %898 = vmatpush1.bf16.msra.mxu0 %v880
    %899 = vmatprep.subr.bf16.mxu0 0
    %900 = vmatpush1.bf16.msra.mxu0 %v881
    %901 = vmatprep.subr.bf16.mxu0 0
    %902 = vmatpush1.bf16.msra.mxu0 %v882
    %903 = vmatprep.subr.bf16.mxu0 0
    %904 = vmatpush1.bf16.msra.mxu0 %v883
    %905 = vmatprep.subr.bf16.mxu0 0
    %906 = vmatpush1.bf16.msra.mxu0 %v884
    %907 = vmatprep.subr.bf16.mxu0 0
    %908 = vmatpush1.bf16.msra.mxu0 %v885
    %909 = vmatprep.subr.bf16.mxu0 0
    %910 = vmatpush1.bf16.msra.mxu0 %v886
    %911 = vmatprep.subr.bf16.mxu0 0
    %912 = vmatpush1.bf16.msra.mxu0 0
    %913 = vmatprep.subr.bf16.mxu0 0
    %914 = vmatpush1.bf16.msra.mxu0 0
    %915 = vmatprep.subr.bf16.mxu0 0
    %916 = vmatpush1.bf16.msra.mxu0 0
    %917 = vmatprep.subr.bf16.mxu0 0
    %918 = vmatpush1.bf16.msra.mxu0 0
    %919 = vmatprep.subr.bf16.mxu0 0
    %920 = vmatpush1.bf16.msra.mxu0 0
    %921 = vmatprep.subr.bf16.mxu0 0
    %922 = vmatpush1.bf16.msra.mxu0 0
    %923 = vmatprep.subr.bf16.mxu0 0
    %924 = vmatpush1.bf16.msra.mxu0 0
    %925 = vmatprep.subr.bf16.mxu0 0
    %926 = vmatpush1.bf16.msra.mxu0 0
    %927 = vmatprep.mubr.bf16.mxu0 0
    %928 = vmatmul.mubr.bf16.gmra.mrb[0].mxu0 %v830
    %v929 = vpop.f32.mrb[0].mxu0
    %v930 = vadd.f32 0.0, %v929
    %v931 = vpop.f32.mrb[0].mxu0
    %v932 = vpop.f32.mrb[0].mxu0
    %v933 = vpop.f32.mrb[0].mxu0
    %934 = vdwg.mxu0
    %v935 = vld [vmem:[%s5] sm:$0x1]
    %v937 = vlaneseq
    %v938 = vshrl.u32 %v937, 7
    %v939 = vsub.s32 0, %v938
    %v940 = vrot.slane %v935, %v939
    %v942 = vmul.f32 %v930, %v940
    %v943 = vld [vmem:[%s6] sm:$0x1]
    %v945 = vlaneseq
    %v946 = vshrl.u32 %v945, 7
    %v947 = vsub.s32 0, %v946
    %v948 = vrot.slane %v943, %v947
    %v950 = vadd.f32 %v942, %v948
    %v951 = vmax.f32 %v950, 0.0
    %v952 = vpack.c.bf16 %v951, %v951
    %v953 = vld [vmem:[#allocation8] sm:$0xf]
    %v954 = vld [vmem:[#allocation8 + $0x4] sm:$0xf]
    %v955 = vld [vmem:[#allocation8 + $0x8] sm:$0xf]
    %v956 = vld [vmem:[#allocation8 + $0xc] sm:$0xf]
    %v957 = vld [vmem:[#allocation8 + $0x10] sm:$0xf]
    %v958 = vld [vmem:[#allocation8 + $0x14] sm:$0xf]
    %v959 = vld [vmem:[#allocation8 + $0x18] sm:$0xf]
    %v960 = vld [vmem:[#allocation8 + $0x1c] sm:$0xf]
    %v961 = vld [vmem:[#allocation8 + $0x20] sm:$0xf]
    %v962 = vld [vmem:[#allocation8 + $0x24] sm:$0xf]
    %v963 = vld [vmem:[#allocation8 + $0x28] sm:$0xf]
    %v964 = vld [vmem:[#allocation8 + $0x2c] sm:$0xf]
    %v965 = vld [vmem:[#allocation8 + $0x30] sm:$0xf]
    %v966 = vld [vmem:[#allocation8 + $0x34] sm:$0xf]
    %v967 = vld [vmem:[#allocation8 + $0x38] sm:$0xf]
    %v968 = vld [vmem:[#allocation8 + $0x3c] sm:$0xf]
    %v969 = vld [vmem:[%s8] sm:$0x1]
    %v971 = vlaneseq
    %v972 = vshrl.u32 %v971, 7
    %v973 = vsub.s32 0, %v972
    %v974 = vrot.slane %v969, %v973
    %v992 = vunpack.c.l.b16 %v953
    %v993 = vunpack.c.l.b16 %v954
    %v994 = vunpack.c.l.b16 %v955
    %v995 = vunpack.c.l.b16 %v956
    %v996 = vunpack.c.l.b16 %v957
    %v997 = vunpack.c.l.b16 %v958
    %v998 = vunpack.c.l.b16 %v959
    %v999 = vunpack.c.l.b16 %v960
    %v1000 = vunpack.c.l.b16 %v961
    %v1001 = vunpack.c.l.b16 %v962
    %v1002 = vunpack.c.l.b16 %v963
    %v1003 = vunpack.c.l.b16 %v964
    %v1004 = vunpack.c.l.b16 %v965
    %v1005 = vunpack.c.l.b16 %v966
    %v1006 = vunpack.c.l.b16 %v967
    %v1007 = vunpack.c.l.b16 %v968
    %v1008 = vpack.c.b16 %v993, %v992
    %v1009 = vpack.c.b16 %v995, %v994
    %v1010 = vpack.c.b16 %v997, %v996
    %v1011 = vpack.c.b16 %v999, %v998
    %v1012 = vpack.c.b16 %v1001, %v1000
    %v1013 = vpack.c.b16 %v1003, %v1002
    %v1014 = vpack.c.b16 %v1005, %v1004
    %v1015 = vpack.c.b16 %v1007, %v1006
    %1024 = vmatprep.subr.bf16.mxu0 0
    %1025 = vmatpush1.bf16.msra.mxu0 %v1008
    %1026 = vmatprep.subr.bf16.mxu0 0
    %1027 = vmatpush1.bf16.msra.mxu0 %v1009
    %1028 = vmatprep.subr.bf16.mxu0 0
    %1029 = vmatpush1.bf16.msra.mxu0 %v1010
    %1030 = vmatprep.subr.bf16.mxu0 0
    %1031 = vmatpush1.bf16.msra.mxu0 %v1011
    %1032 = vmatprep.subr.bf16.mxu0 0
    %1033 = vmatpush1.bf16.msra.mxu0 %v1012
    %1034 = vmatprep.subr.bf16.mxu0 0
    %1035 = vmatpush1.bf16.msra.mxu0 %v1013
    %1036 = vmatprep.subr.bf16.mxu0 0
    %1037 = vmatpush1.bf16.msra.mxu0 %v1014
    %1038 = vmatprep.subr.bf16.mxu0 0
    %1039 = vmatpush1.bf16.msra.mxu0 %v1015
    %1040 = vmatprep.subr.bf16.mxu0 0
    %1041 = vmatpush1.bf16.msra.mxu0 0
    %1042 = vmatprep.subr.bf16.mxu0 0
    %1043 = vmatpush1.bf16.msra.mxu0 0
    %1044 = vmatprep.subr.bf16.mxu0 0
    %1045 = vmatpush1.bf16.msra.mxu0 0
    %1046 = vmatprep.subr.bf16.mxu0 0
    %1047 = vmatpush1.bf16.msra.mxu0 0
    %1048 = vmatprep.subr.bf16.mxu0 0
    %1049 = vmatpush1.bf16.msra.mxu0 0
    %1050 = vmatprep.subr.bf16.mxu0 0
    %1051 = vmatpush1.bf16.msra.mxu0 0
    %1052 = vmatprep.subr.bf16.mxu0 0
    %1053 = vmatpush1.bf16.msra.mxu0 0
    %1054 = vmatprep.subr.bf16.mxu0 0
    %1055 = vmatpush1.bf16.msra.mxu0 0
    %1056 = vmatprep.mubr.bf16.mxu0 0
    %1057 = vmatmul.mubr.bf16.gmra.mrb[0].mxu0 %v952
    %v1058 = vpop.f32.mrb[0].mxu0
    %v1059 = vadd.f32 %v974, %v1058
    %v1060 = vpop.f32.mrb[0].mxu0
    %v1061 = vpop.f32.mrb[0].mxu0
    %v1062 = vpop.f32.mrb[0].mxu0
    %1063 = vdwg.mxu0
    %v1064 = vlaneseq
    %v1065 = vand.u32 %v1064, 127
    %vm1066 = vcmp.lt.s32.totalorder %v1065, 10
    %v1067 = vsel %vm1066, %v1059, -1e+30
    %vm1068 = vcmask 1041408
    %v1069 = vsel %vm1068, %v1067, -inf
    %1070 = vmax.xlane.f32.xlu0 %v1069
    %v1071 = vpop.xlane.xlu0 %1070
    %v1072 = vsub.f32 %v1067, %v1071
    %v1073 = vmul.f32 %v1072, 1.442695
    %v1074 = vpow.pop %v1073
    %v1075 = vsel %vm1068, %v1074, 0.0
    %1076 = vadd.xlane.f32.xlu0 %v1075
    %v1077 = vpop.xlane.xlu0 %1076
    %v1078 = vlog2.pop %v1077
    %v1079 = vmul.f32 %v1078, 0.6931472
    %v1080 = vsub.f32 %v1072, %v1079
    %1081 = vst [vmem:[#allocation10] sm:$0x3] %v1080
    // Predicated region
    $region54: #{tpu_custom_call.1} parent=1 // pred_check
      _
    $region55: #{tpu_custom_call.1} parent=1 // pred_check_branch
      %1083 = sbr.rel (0) target = $region57
    $region56: #{tpu_custom_call.1} parent=1 // pred_region
      %s1085 = ssub.s32 32, 32
      %1086 = vsyncadd [#allocation4], %s1085
      %s1088 = sshll.u32 [#allocation10], 4
      %s1089 = int_to_ptr.vmem [resolvable:$true] %s1088
      %1091 = dma.vmem_to_hbm [thread:$0]  %s1089, 32, %s9, [#allocation4]
    $region57: #{tpu_custom_call.1} parent=1 // pred_fallthru
      _
    // Predicated region
    $region58: #{tpu_custom_call.1} parent=1 // pred_check
      _
    $region59: #{tpu_custom_call.1} parent=1 // pred_check_branch
      %1093 = sbr.rel (0) target = $region61
    $region60: #{tpu_custom_call.1} parent=1 // pred_region
      %1094 = dma.done [#allocation4], 32
    $region61: #{tpu_custom_call.1} parent=1 // pred_fallthru
      _
    %1095 = vsyncpa [#allocation3], 1
    %1096 = vsyncpa [#allocation6], 1
    %1097 = vsyncpa [#allocation9], 1
    %1098 = vsyncpa [#allocation4], 1

</llo_original>
